<compile_context>
chip_gen: v7x
topology: tpu7x:2x2x1
jax: 0.10.0
libtpu: 0.0.40
codegen_flags: <defaults>
</compile_context>

<pallas_src>
import functools

import jax
import jax.numpy as jnp
from jax import lax
from jax.experimental import pallas as pl
from jax.experimental.pallas import tpu as pltpu


# ---------------------------------------------------------------------------
# Pallas kernel: full forward pass for one batch tile.
# ---------------------------------------------------------------------------
def cnn_classifier_kernel(xd_ref, wrow_ref, brow_ref, w1t_ref, b1_ref, w2_ref,
                          b2_ref, out_ref, *, pool, ksize, group_len, pool_len,
                          out_ch):
    P, K, Lg, Lp, O = pool, ksize, group_len, pool_len, out_ch

    x = xd_ref[...]                       # (TB, P*Lg) f32, de-interleaved by phase
    wk = wrow_ref[...]                    # (K, O*Lp)  f32, tap k repeated per chan

    # Pooling-phase views x[b, P*tp + s] for shift s = p + k: contiguous slices
    # of the de-interleaved input, replicated across the O conv channels along
    # lanes (o-major, i.e. PyTorch Flatten order).
    tiles = []
    for s in range(P + K - 1):
        g, off = s % P, s // P
        xs = x[:, g * Lg + off: g * Lg + off + Lp]          # (TB, Lp)
        tiles.append(jnp.concatenate([xs] * O, axis=-1))    # (TB, O*Lp)

    # Conv1d (VPU multiply-adds) per pooling phase, then MaxPool1d over phases.
    pooled = None
    for p in range(P):
        conv_p = tiles[p] * wk[0:1, :]
        for k in range(1, K):
            conv_p = conv_p + tiles[p + k] * wk[k:k + 1, :]
        pooled = conv_p if pooled is None else jnp.maximum(pooled, conv_p)
    pooled = pooled + brow_ref[...]                          # (TB, O*Lp) == flat

    # Linear(O*Lp, l1) on the MXU (bf16 operands, f32 accumulate) + ReLU.
    h = jnp.dot(pooled.astype(w1t_ref.dtype), w1t_ref[...],
                preferred_element_type=jnp.float32)
    h = jnp.maximum(h + b1_ref[...], 0.0)                    # (TB, l1) f32

    # Linear(l1, 1): (1, l1) @ (TB, l1)^T -> lane-dense (1, TB) logit row
    # (batch on lanes), so the output store is not a masked last-dim-1 write.
    logit = lax.dot_general(w2_ref[...], h, (((1,), (1,)), ((), ())),
                            preferred_element_type=jnp.float32) + b2_ref[0]
    # Sigmoid: EUP exp + approximate EUP reciprocal.
    prob = pl.reciprocal(1.0 + jnp.exp(-logit), approx=True)  # (1, TB)
    out_ref[...] = prob[None]                                 # (1, 1, TB)


# ---------------------------------------------------------------------------
# One-time parameter packing (hoisted out of the per-forward path).
# ---------------------------------------------------------------------------
def pack_cnn_params(wconv, bconv, w1, b1, w2, b2, *, max_pool=2,
                    mxu_dtype=jnp.bfloat16):
    del max_pool  # packing is independent of the pool size
    wconv = jnp.asarray(wconv, jnp.float32)
    if wconv.ndim == 3:                       # PyTorch Conv1d weight (O, 1, K)
        wconv = wconv[:, 0, :]
    O, _K = wconv.shape
    l1, F = jnp.asarray(w1).shape
    Lp = F // O
    wrow = jnp.repeat(wconv.T, Lp, axis=1)                          # (K, O*Lp)
    brow = jnp.repeat(jnp.asarray(bconv, jnp.float32), Lp)[None]    # (1, O*Lp)
    w1t = jnp.asarray(w1, jnp.float32).T.astype(mxu_dtype)          # (O*Lp, l1)
    b1row = jnp.asarray(b1, jnp.float32).reshape(1, l1)
    w2row = jnp.asarray(w2, jnp.float32).reshape(1, l1)
    b2vec = jnp.asarray(b2, jnp.float32).reshape(1)                 # SMEM scalar
    return wrow, brow, w1t, b1row, w2row, b2vec


def _round_up(x, m):
    return ((x + m - 1) // m) * m


def _pick_block_b(B, lanes, block_b):
    """Batch tile: sublane-aligned, lane-dense when large, VMEM-aware."""
    if block_b is not None:
        return max(8, _round_up(block_b, 8))
    tb = min(_round_up(max(B, 1), 8), 512)
    if tb > 128:
        tb = _round_up(tb, 128)            # keep the (1, TB) output store unmasked
    cap = max(8, ((2 * 1024 * 1024) // max(lanes * 4, 1)) // 8 * 8)
    return max(8, min(tb, cap))            # <= ~2 MiB per double-buffered input tile


# ---------------------------------------------------------------------------
# Forward wrapper: input layout glue + pallas_call.
# ---------------------------------------------------------------------------
@functools.partial(jax.jit, static_argnames=("kernel_size", "max_pool", "block_b"))
def cnn_classifier_forward(x, wrow, brow, w1t, b1row, w2row, b2vec, *,
                           kernel_size=3, max_pool=2, block_b=None):
    K, P = kernel_size, max_pool
    B = x.shape[0]
    x2d = x.reshape(B, -1).astype(jnp.float32)
    L = x2d.shape[1]
    Lp = (L - K + 1) // P
    F, l1 = w1t.shape
    O = F // Lp
    Lg = max(-(-L // P), Lp + (K + P - 2) // P)   # group length after de-interleave

    TB = _pick_block_b(B, P * Lg, block_b)
    Bp = _round_up(B, TB)
    G = Bp // TB

    # De-interleave the input by pooling phase so every in-kernel slice is
    # contiguous:  xd[b, g*Lg + j] = x[b, P*j + g]   (zero padded past L / B).
    x2d = jnp.pad(x2d, ((0, Bp - B), (0, P * Lg - L)))
    xd = x2d.reshape(Bp, Lg, P).transpose(0, 2, 1).reshape(Bp, P * Lg)

    kern = functools.partial(cnn_classifier_kernel, pool=P, ksize=K,
                             group_len=Lg, pool_len=Lp, out_ch=O)
    resident = lambda shape: pl.BlockSpec(shape, lambda i: (0,) * len(shape))

    out = pl.pallas_call(
        kern,
        out_shape=jax.ShapeDtypeStruct((G, 1, TB), jnp.float32),
        grid=(G,),
        in_specs=[
            pl.BlockSpec((TB, P * Lg), lambda i: (i, 0)),       # per-tile input
            resident((K, F)),                                    # conv taps
            resident((1, F)),                                    # conv bias row
            resident((F, l1)),                                   # Linear1 weight (bf16)
            resident((1, l1)),                                   # Linear1 bias
            resident((1, l1)),                                   # Linear2 weight row
            pl.BlockSpec(memory_space=pltpu.MemorySpace.SMEM),   # Linear2 bias scalar
        ],
        out_specs=pl.BlockSpec((1, 1, TB), lambda i: (i, 0, 0)),
        compiler_params=pltpu.CompilerParams(
            dimension_semantics=("parallel",)),
    )(xd, wrow, brow, w1t, b1row, w2row, b2vec)
    return out.reshape(G * TB)[:B].reshape(B, 1)


# ---------------------------------------------------------------------------
# Pure-JAX reference (mirrors the PyTorch module exactly, f32).
# ---------------------------------------------------------------------------
def reference_forward(x, wconv, bconv, w1, b1, w2, b2, kernel_size=3, max_pool=2):
    B, _, L = x.shape
    O, K = wconv.shape
    Lout = L - K + 1
    Lp = Lout // max_pool
    x2d = x.reshape(B, L)
    cols = jnp.stack([x2d[:, k:k + Lout] for k in range(K)], axis=-1)        # (B, Lout, K)
    conv = jnp.einsum("blk,ok->bol", cols, wconv) + bconv[None, :, None]     # (B, O, Lout)
    pooled = conv[:, :, :Lp * max_pool].reshape(B, O, Lp, max_pool).max(-1)  # (B, O, Lp)
    flat = pooled.reshape(B, O * Lp)                                         # PyTorch flatten
    h = jnp.maximum(flat @ w1.T + b1, 0.0)
    return jax.nn.sigmoid(h @ w2.T + b2)


if __name__ == "__main__":
    # Module config (defaults): input_size=16, out=16, kernel_size=3, max_pool=2, l1=32
    B, L, O, K, P, L1 = 2, 16, 16, 3, 2, 32
    Lp = (L - K + 1) // P
    F = O * Lp  # 112

    key = jax.random.PRNGKey(0)
    kx, kcw, kcb, kw1, kb1, kw2, kb2 = jax.random.split(key, 7)

    x = jax.random.normal(kx, (B, 1, L), dtype=jnp.float32)             # NCW input
    wconv = jax.random.normal(kcw, (O, 1, K), dtype=jnp.float32) * 0.3  # Conv1d(1,O,K) weight
    bconv = jax.random.normal(kcb, (O,), dtype=jnp.float32) * 0.1
    w1 = jax.random.normal(kw1, (L1, F), dtype=jnp.float32) * 0.1       # Linear(F, L1)
    b1 = jax.random.normal(kb1, (L1,), dtype=jnp.float32) * 0.1
    w2 = jax.random.normal(kw2, (1, L1), dtype=jnp.float32) * 0.1       # Linear(L1, 1)
    b2 = jax.random.normal(kb2, (1,), dtype=jnp.float32) * 0.1

    packed = pack_cnn_params(wconv, bconv, w1, b1, w2, b2, max_pool=P)
    out = cnn_classifier_forward(x, *packed, kernel_size=K, max_pool=P)
    out = jax.block_until_ready(out)

    ref = reference_forward(x, wconv[:, 0, :], bconv, w1, b1, w2, b2,
                            kernel_size=K, max_pool=P)
    assert out.shape == (B, 1)
    # bf16 MXU operands + approximate EUP reciprocal -> loosened tolerance.
    assert jnp.allclose(out, ref, atol=2e-2, rtol=2e-2), (out, ref)
    print("KERNEL_OK")
</pallas_src>

<mosaic_0001>
module attributes {stable_mosaic.version = 11 : i64} {
  func.func @cnn_classifier_kernel(%arg0: i32, %arg1: memref<8x16xf32, #tpu.memory_space<vmem>>, %arg2: memref<3x112xf32, #tpu.memory_space<vmem>>, %arg3: memref<1x112xf32, #tpu.memory_space<vmem>>, %arg4: memref<112x32xbf16, #tpu.memory_space<vmem>>, %arg5: memref<1x32xf32, #tpu.memory_space<vmem>>, %arg6: memref<1x32xf32, #tpu.memory_space<vmem>>, %arg7: memref<1xf32, #tpu.memory_space<smem>>, %arg8: memref<1x1x8xf32, #tpu.memory_space<vmem>>) attributes {dimension_semantics = [#tpu.dimension_semantics<parallel>], iteration_bounds = array<i64: 1>, scalar_prefetch = 0 : i64, scratch_operands = 0 : i64, tpu.core_type = #tpu.core_type<tc>, window_params = [{transform_indices = @transform_0, window_bounds = array<i64: 8, 16>}, {pipeline_mode = #tpu.pipeline_mode<synchronous>, transform_indices = @transform_1, window_bounds = array<i64: 3, 112>}, {pipeline_mode = #tpu.pipeline_mode<synchronous>, transform_indices = @transform_2, window_bounds = array<i64: 1, 112>}, {pipeline_mode = #tpu.pipeline_mode<synchronous>, transform_indices = @transform_3, window_bounds = array<i64: 112, 32>}, {pipeline_mode = #tpu.pipeline_mode<synchronous>, transform_indices = @transform_4, window_bounds = array<i64: 1, 32>}, {pipeline_mode = #tpu.pipeline_mode<synchronous>, transform_indices = @transform_5, window_bounds = array<i64: 1, 32>}, {transform_indices = @transform_6, window_bounds = array<i64: 1>}, {transform_indices = @transform_7, window_bounds = array<i64: 1, 1, 8>}]} {
    %c0 = arith.constant 0 : index
    %c0_0 = arith.constant 0 : index
    %0 = vector.load %arg1[%c0, %c0_0] : memref<8x16xf32, #tpu.memory_space<vmem>>, vector<8x16xf32>
    %c0_1 = arith.constant 0 : index
    %c0_2 = arith.constant 0 : index
    %1 = vector.load %arg2[%c0_1, %c0_2] : memref<3x112xf32, #tpu.memory_space<vmem>>, vector<3x112xf32>
    %2 = vector.extract_strided_slice %0 {offsets = [0, 0], sizes = [8, 7], strides = [1, 1]} : vector<8x16xf32> to vector<8x7xf32>
    %3 = tpu.concatenate %2, %2, %2, %2, %2, %2, %2, %2, %2, %2, %2, %2, %2, %2, %2, %2 in 1 : vector<8x7xf32>, vector<8x7xf32>, vector<8x7xf32>, vector<8x7xf32>, vector<8x7xf32>, vector<8x7xf32>, vector<8x7xf32>, vector<8x7xf32>, vector<8x7xf32>, vector<8x7xf32>, vector<8x7xf32>, vector<8x7xf32>, vector<8x7xf32>, vector<8x7xf32>, vector<8x7xf32>, vector<8x7xf32> -> vector<8x112xf32>
    %4 = vector.extract_strided_slice %0 {offsets = [0, 8], sizes = [8, 7], strides = [1, 1]} : vector<8x16xf32> to vector<8x7xf32>
    %5 = tpu.concatenate %4, %4, %4, %4, %4, %4, %4, %4, %4, %4, %4, %4, %4, %4, %4, %4 in 1 : vector<8x7xf32>, vector<8x7xf32>, vector<8x7xf32>, vector<8x7xf32>, vector<8x7xf32>, vector<8x7xf32>, vector<8x7xf32>, vector<8x7xf32>, vector<8x7xf32>, vector<8x7xf32>, vector<8x7xf32>, vector<8x7xf32>, vector<8x7xf32>, vector<8x7xf32>, vector<8x7xf32>, vector<8x7xf32> -> vector<8x112xf32>
    %6 = vector.extract_strided_slice %0 {offsets = [0, 1], sizes = [8, 7], strides = [1, 1]} : vector<8x16xf32> to vector<8x7xf32>
    %7 = tpu.concatenate %6, %6, %6, %6, %6, %6, %6, %6, %6, %6, %6, %6, %6, %6, %6, %6 in 1 : vector<8x7xf32>, vector<8x7xf32>, vector<8x7xf32>, vector<8x7xf32>, vector<8x7xf32>, vector<8x7xf32>, vector<8x7xf32>, vector<8x7xf32>, vector<8x7xf32>, vector<8x7xf32>, vector<8x7xf32>, vector<8x7xf32>, vector<8x7xf32>, vector<8x7xf32>, vector<8x7xf32>, vector<8x7xf32> -> vector<8x112xf32>
    %8 = vector.extract_strided_slice %0 {offsets = [0, 9], sizes = [8, 7], strides = [1, 1]} : vector<8x16xf32> to vector<8x7xf32>
    %9 = tpu.concatenate %8, %8, %8, %8, %8, %8, %8, %8, %8, %8, %8, %8, %8, %8, %8, %8 in 1 : vector<8x7xf32>, vector<8x7xf32>, vector<8x7xf32>, vector<8x7xf32>, vector<8x7xf32>, vector<8x7xf32>, vector<8x7xf32>, vector<8x7xf32>, vector<8x7xf32>, vector<8x7xf32>, vector<8x7xf32>, vector<8x7xf32>, vector<8x7xf32>, vector<8x7xf32>, vector<8x7xf32>, vector<8x7xf32> -> vector<8x112xf32>
    %10 = vector.extract_strided_slice %1 {offsets = [0, 0], sizes = [1, 112], strides = [1, 1]} : vector<3x112xf32> to vector<1x112xf32>
    %11 = vector.broadcast %10 : vector<1x112xf32> to vector<8x112xf32>
    %12 = arith.mulf %3, %11 : vector<8x112xf32>
    %13 = vector.extract_strided_slice %1 {offsets = [1, 0], sizes = [1, 112], strides = [1, 1]} : vector<3x112xf32> to vector<1x112xf32>
    %14 = vector.broadcast %13 : vector<1x112xf32> to vector<8x112xf32>
    %15 = arith.mulf %5, %14 : vector<8x112xf32>
    %16 = arith.addf %12, %15 : vector<8x112xf32>
    %17 = vector.extract_strided_slice %1 {offsets = [2, 0], sizes = [1, 112], strides = [1, 1]} : vector<3x112xf32> to vector<1x112xf32>
    %18 = vector.broadcast %17 : vector<1x112xf32> to vector<8x112xf32>
    %19 = arith.mulf %7, %18 : vector<8x112xf32>
    %20 = arith.addf %16, %19 : vector<8x112xf32>
    %21 = vector.extract_strided_slice %1 {offsets = [0, 0], sizes = [1, 112], strides = [1, 1]} : vector<3x112xf32> to vector<1x112xf32>
    %22 = vector.broadcast %21 : vector<1x112xf32> to vector<8x112xf32>
    %23 = arith.mulf %5, %22 : vector<8x112xf32>
    %24 = vector.extract_strided_slice %1 {offsets = [1, 0], sizes = [1, 112], strides = [1, 1]} : vector<3x112xf32> to vector<1x112xf32>
    %25 = vector.broadcast %24 : vector<1x112xf32> to vector<8x112xf32>
    %26 = arith.mulf %7, %25 : vector<8x112xf32>
    %27 = arith.addf %23, %26 : vector<8x112xf32>
    %28 = vector.extract_strided_slice %1 {offsets = [2, 0], sizes = [1, 112], strides = [1, 1]} : vector<3x112xf32> to vector<1x112xf32>
    %29 = vector.broadcast %28 : vector<1x112xf32> to vector<8x112xf32>
    %30 = arith.mulf %9, %29 : vector<8x112xf32>
    %31 = arith.addf %27, %30 : vector<8x112xf32>
    %32 = arith.maximumf %20, %31 : vector<8x112xf32>
    %c0_3 = arith.constant 0 : index
    %c0_4 = arith.constant 0 : index
    %33 = vector.load %arg3[%c0_3, %c0_4] : memref<1x112xf32, #tpu.memory_space<vmem>>, vector<1x112xf32>
    %34 = vector.broadcast %33 : vector<1x112xf32> to vector<8x112xf32>
    %35 = arith.addf %32, %34 : vector<8x112xf32>
    %36 = arith.truncf %35 : vector<8x112xf32> to vector<8x112xbf16>
    %c0_5 = arith.constant 0 : index
    %c0_6 = arith.constant 0 : index
    %37 = vector.load %arg4[%c0_5, %c0_6] : memref<112x32xbf16, #tpu.memory_space<vmem>>, vector<112x32xbf16>
    %cst = arith.constant dense<0.000000e+00> : vector<8x32xf32>
    %38 = tpu.matmul %36, %37, %cst {dimension_numbers = #tpu.dot_dimension_numbers<[1], [0], [0], [1], [0, 0, 1, 1], [], []>} : vector<8x112xbf16>, vector<112x32xbf16>, vector<8x32xf32> -> vector<8x32xf32>
    %c0_7 = arith.constant 0 : index
    %c0_8 = arith.constant 0 : index
    %39 = vector.load %arg5[%c0_7, %c0_8] : memref<1x32xf32, #tpu.memory_space<vmem>>, vector<1x32xf32>
    %40 = vector.broadcast %39 : vector<1x32xf32> to vector<8x32xf32>
    %41 = arith.addf %38, %40 : vector<8x32xf32>
    %cst_9 = arith.constant 0.000000e+00 : f32
    %42 = vector.broadcast %cst_9 : f32 to vector<8x32xf32>
    %43 = arith.maximumf %41, %42 : vector<8x32xf32>
    %c0_10 = arith.constant 0 : index
    %c0_11 = arith.constant 0 : index
    %44 = vector.load %arg6[%c0_10, %c0_11] : memref<1x32xf32, #tpu.memory_space<vmem>>, vector<1x32xf32>
    %cst_12 = arith.constant dense<0.000000e+00> : vector<1x8xf32>
    %45 = tpu.matmul %44, %43, %cst_12 {dimension_numbers = #tpu.dot_dimension_numbers<[1], [1], [0], [0], [0, 0, 1, 0], [], []>} : vector<1x32xf32>, vector<8x32xf32>, vector<1x8xf32> -> vector<1x8xf32>
    %c0_13 = arith.constant 0 : index
    %46 = memref.load %arg7[%c0_13] : memref<1xf32, #tpu.memory_space<smem>>
    %47 = vector.broadcast %46 : f32 to vector<1x8xf32>
    %48 = arith.addf %45, %47 : vector<1x8xf32>
    %cst_14 = arith.constant 0.000000e+00 : f32
    %49 = vector.broadcast %cst_14 : f32 to vector<1x8xf32>
    %50 = arith.subf %49, %48 : vector<1x8xf32>
    %51 = math.exp %50 : vector<1x8xf32>
    %cst_15 = arith.constant 1.000000e+00 : f32
    %52 = vector.broadcast %cst_15 : f32 to vector<1x8xf32>
    %53 = arith.addf %52, %51 : vector<1x8xf32>
    %54 = tpu.reciprocal %53 {approx = true} : vector<1x8xf32> -> vector<1x8xf32>
    %55 = vector.shape_cast %54 : vector<1x8xf32> to vector<1x1x8xf32>
    %c0_16 = arith.constant 0 : index
    %c0_17 = arith.constant 0 : index
    %c0_18 = arith.constant 0 : index
    %56 = vector.load %arg8[%c0_16, %c0_17, %c0_18] : memref<1x1x8xf32, #tpu.memory_space<vmem>>, vector<1x1x8xf32>
    tpu.vector_store %arg8[%c0_16, %c0_17, %c0_18], %55 {strides = array<i32>} : memref<1x1x8xf32, #tpu.memory_space<vmem>>, vector<1x1x8xf32>,
    return
  }
  func.func @transform_0(%arg0: i32) -> (i32, i32) {
    %c0_i32 = arith.constant 0 : i32
    %c0_i32_0 = arith.constant 0 : i32
    return %arg0, %c0_i32 : i32, i32
  }
  func.func @transform_1(%arg0: i32) -> (i32, i32) {
    %c0_i32 = arith.constant 0 : i32
    %c0_i32_0 = arith.constant 0 : i32
    %c0_i32_1 = arith.constant 0 : i32
    return %c0_i32, %c0_i32_0 : i32, i32
  }
  func.func @transform_2(%arg0: i32) -> (i32, i32) {
    %c0_i32 = arith.constant 0 : i32
    %c0_i32_0 = arith.constant 0 : i32
    %c0_i32_1 = arith.constant 0 : i32
    return %c0_i32, %c0_i32_0 : i32, i32
  }
  func.func @transform_3(%arg0: i32) -> (i32, i32) {
    %c0_i32 = arith.constant 0 : i32
    %c0_i32_0 = arith.constant 0 : i32
    %c0_i32_1 = arith.constant 0 : i32
    return %c0_i32, %c0_i32_0 : i32, i32
  }
  func.func @transform_4(%arg0: i32) -> (i32, i32) {
    %c0_i32 = arith.constant 0 : i32
    %c0_i32_0 = arith.constant 0 : i32
    %c0_i32_1 = arith.constant 0 : i32
    return %c0_i32, %c0_i32_0 : i32, i32
  }
  func.func @transform_5(%arg0: i32) -> (i32, i32) {
    %c0_i32 = arith.constant 0 : i32
    %c0_i32_0 = arith.constant 0 : i32
    %c0_i32_1 = arith.constant 0 : i32
    return %c0_i32, %c0_i32_0 : i32, i32
  }
  func.func @transform_6(%arg0: i32) -> i32 {
    %c0_i32 = arith.constant 0 : i32
    %c0_i32_0 = arith.constant 0 : i32
    return %c0_i32 : i32
  }
  func.func @transform_7(%arg0: i32) -> (i32, i32, i32) {
    %c0_i32 = arith.constant 0 : i32
    %c0_i32_0 = arith.constant 0 : i32
    %c0_i32_1 = arith.constant 0 : i32
    return %arg0, %c0_i32, %c0_i32_0 : i32, i32, i32
  }
}

</mosaic_0001>

<llo_original>
// kernel: cnn_classifier_forward.1
$region0: #{cnn_classifier_forward.1}
  #allocation0 [shape = 'u32[]', space=smem, size = 0x4, offset = 0x4, fixed_abs, tag = 'smem constant byte address 0x4 - core index']
  #allocation1 [shape = 'u32[144,128]{1,0:T(1,128)}', space=vmem, size = 0x12000, scoped, tag = 'internal scratch']
  #allocation2 [shape = 'f32[1]{0:T(128)S(6)}', space=smem, size = 0x200, scoped, tag = 'scoped memory for cnn_classifier_forward.1']
  %s0 = inlined_call_operand.vmem [shape: f32[8,16], index: 0, kind: input, shape index: {}]
  %s1 = inlined_call_operand.vmem [shape: f32[3,112], index: 1, kind: input, shape index: {}]
  %s2 = inlined_call_operand.vmem [shape: f32[1,112], index: 2, kind: input, shape index: {}]
  %s3 = inlined_call_operand.vmem [shape: bf16[112,32], index: 3, kind: input, shape index: {}]
  %s4 = inlined_call_operand.vmem [shape: f32[1,32], index: 4, kind: input, shape index: {}]
  %s5 = inlined_call_operand.vmem [shape: f32[1,32], index: 5, kind: input, shape index: {}]
  %s6 = inlined_call_operand.<no memory space> [shape: f32[1], index: 6, kind: input, shape index: {}]
  %s7 = inlined_call_operand.vmem [shape: f32[1,1,8], index: 7, kind: output, shape index: {}]
  %s8 = sld [smem:[#allocation0]]
  $region38: #{cnn_classifier_forward.1} parent=0
    _
  %s10 = ssub.s32 1, %s8
  %s11 = scalar_select 0, %s10, %s8
  %12 = sst [smem:[#allocation2]] %s6
  // Predicated region
  $region2: #{cnn_classifier_forward.1} parent=0 // pred_check
    _
  $region3: #{cnn_classifier_forward.1} parent=0 // pred_check_branch
    %14 = sbr.rel (0) target = $region5
  $region4: #{cnn_classifier_forward.1} parent=0 // pred_region
    _
  $region5: #{cnn_classifier_forward.1} parent=0 // pred_fallthru
    _
  // Predicated region
  $region6: #{cnn_classifier_forward.1} parent=0 // pred_check
    _
  $region7: #{cnn_classifier_forward.1} parent=0 // pred_check_branch
    %16 = sbr.rel (0) target = $region9
  $region8: #{cnn_classifier_forward.1} parent=0 // pred_region
    _
  $region9: #{cnn_classifier_forward.1} parent=0 // pred_fallthru
    _
  // Predicated region
  $region10: #{cnn_classifier_forward.1} parent=0 // pred_check
    _
  $region11: #{cnn_classifier_forward.1} parent=0 // pred_check_branch
    %18 = sbr.rel (0) target = $region13
  $region12: #{cnn_classifier_forward.1} parent=0 // pred_region
    _
  $region13: #{cnn_classifier_forward.1} parent=0 // pred_fallthru
    _
  // Predicated region
  $region14: #{cnn_classifier_forward.1} parent=0 // pred_check
    _
  $region15: #{cnn_classifier_forward.1} parent=0 // pred_check_branch
    %20 = sbr.rel (0) target = $region17
  $region16: #{cnn_classifier_forward.1} parent=0 // pred_region
    _
  $region17: #{cnn_classifier_forward.1} parent=0 // pred_fallthru
    _
  // Predicated region
  $region18: #{cnn_classifier_forward.1} parent=0 // pred_check
    _
  $region19: #{cnn_classifier_forward.1} parent=0 // pred_check_branch
    %22 = sbr.rel (0) target = $region21
  $region20: #{cnn_classifier_forward.1} parent=0 // pred_region
    _
  $region21: #{cnn_classifier_forward.1} parent=0 // pred_fallthru
    _
  // Predicated region
  $region22: #{cnn_classifier_forward.1} parent=0 // pred_check
    _
  $region23: #{cnn_classifier_forward.1} parent=0 // pred_check_branch
    %24 = sbr.rel (0) target = $region25
  $region24: #{cnn_classifier_forward.1} parent=0 // pred_region
    _
  $region25: #{cnn_classifier_forward.1} parent=0 // pred_fallthru
    _
  // Predicated region
  $region26: #{cnn_classifier_forward.1} parent=0 // pred_check
    _
  $region27: #{cnn_classifier_forward.1} parent=0 // pred_check_branch
    %26 = sbr.rel (0) target = $region29
  $region28: #{cnn_classifier_forward.1} parent=0 // pred_region
    _
  $region29: #{cnn_classifier_forward.1} parent=0 // pred_fallthru
    _
  %v28 = vld [vmem:[%s0] sm:$0xff]
  %v29 = vld [vmem:[%s1] sm:$0x7]
  %31 = vrot.lane.b32.xlu0 %v28, 7
  %v32 = vpop.permute.xlu0 %31
  %34 = vrot.lane.b32.xlu0 %v28, 14
  %v35 = vpop.permute.xlu0 %34
  %37 = vrot.lane.b32.xlu0 %v28, 21
  %v38 = vpop.permute.xlu0 %37
  %40 = vrot.lane.b32.xlu0 %v28, 28
  %v41 = vpop.permute.xlu0 %40
  %43 = vrot.lane.b32.xlu0 %v28, 35
  %v44 = vpop.permute.xlu0 %43
  %46 = vrot.lane.b32.xlu0 %v28, 42
  %v47 = vpop.permute.xlu0 %46
  %49 = vrot.lane.b32.xlu0 %v28, 49
  %v50 = vpop.permute.xlu0 %49
  %52 = vrot.lane.b32.xlu0 %v28, 56
  %v53 = vpop.permute.xlu0 %52
  %55 = vrot.lane.b32.xlu0 %v28, 63
  %v56 = vpop.permute.xlu0 %55
  %58 = vrot.lane.b32.xlu0 %v28, 70
  %v59 = vpop.permute.xlu0 %58
  %61 = vrot.lane.b32.xlu0 %v28, 77
  %v62 = vpop.permute.xlu0 %61
  %64 = vrot.lane.b32.xlu0 %v28, 84
  %v65 = vpop.permute.xlu0 %64
  %67 = vrot.lane.b32.xlu0 %v28, 91
  %v68 = vpop.permute.xlu0 %67
  %70 = vrot.lane.b32.xlu0 %v28, 98
  %v71 = vpop.permute.xlu0 %70
  %73 = vrot.lane.b32.xlu0 %v28, 105
  %v74 = vpop.permute.xlu0 %73
  %vm76 = vcmask 56320
  %v77 = vsel %vm76, %v28, %v32
  %vm78 = vcmask 113664
  %v79 = vsel %vm78, %v77, %v35
  %vm80 = vcmask 171008
  %v81 = vsel %vm80, %v79, %v38
  %vm82 = vcmask 228352
  %v83 = vsel %vm82, %v81, %v41
  %vm84 = vcmask 285696
  %v85 = vsel %vm84, %v83, %v44
  %vm86 = vcmask 343040
  %v87 = vsel %vm86, %v85, %v47
  %vm88 = vcmask 400384
  %v89 = vsel %vm88, %v87, %v50
  %vm90 = vcmask 457728
  %v91 = vsel %vm90, %v89, %v53
  %vm92 = vcmask 515072
  %v93 = vsel %vm92, %v91, %v56
  %vm94 = vcmask 572416
  %v95 = vsel %vm94, %v93, %v59
  %vm96 = vcmask 629760
  %v97 = vsel %vm96, %v95, %v62
  %vm98 = vcmask 687104
  %v99 = vsel %vm98, %v97, %v65
  %vm100 = vcmask 744448
  %v101 = vsel %vm100, %v99, %v68
  %vm102 = vcmask 801792
  %v103 = vsel %vm102, %v101, %v71
  %vm104 = vcmask 859136
  %v105 = vsel %vm104, %v103, %v74
  %106 = vrot.lane.b32.xlu0 %v28, 120
  %v107 = vpop.permute.xlu0 %106
  %109 = vrot.lane.b32.xlu0 %v28, 127
  %v110 = vpop.permute.xlu0 %109
  %112 = vrot.lane.b32.xlu0 %v28, 6
  %v113 = vpop.permute.xlu0 %112
  %115 = vrot.lane.b32.xlu0 %v28, 13
  %v116 = vpop.permute.xlu0 %115
  %118 = vrot.lane.b32.xlu0 %v28, 20
  %v119 = vpop.permute.xlu0 %118
  %121 = vrot.lane.b32.xlu0 %v28, 27
  %v122 = vpop.permute.xlu0 %121
  %124 = vrot.lane.b32.xlu0 %v28, 34
  %v125 = vpop.permute.xlu0 %124
  %127 = vrot.lane.b32.xlu0 %v28, 41
  %v128 = vpop.permute.xlu0 %127
  %130 = vrot.lane.b32.xlu0 %v28, 48
  %v131 = vpop.permute.xlu0 %130
  %133 = vrot.lane.b32.xlu0 %v28, 55
  %v134 = vpop.permute.xlu0 %133
  %136 = vrot.lane.b32.xlu0 %v28, 62
  %v137 = vpop.permute.xlu0 %136
  %139 = vrot.lane.b32.xlu0 %v28, 69
  %v140 = vpop.permute.xlu0 %139
  %142 = vrot.lane.b32.xlu0 %v28, 76
  %v143 = vpop.permute.xlu0 %142
  %145 = vrot.lane.b32.xlu0 %v28, 83
  %v146 = vpop.permute.xlu0 %145
  %148 = vrot.lane.b32.xlu0 %v28, 90
  %v149 = vpop.permute.xlu0 %148
  %151 = vrot.lane.b32.xlu0 %v28, 97
  %v152 = vpop.permute.xlu0 %151
  %v154 = vsel %vm76, %v107, %v110
  %v155 = vsel %vm78, %v154, %v113
  %v156 = vsel %vm80, %v155, %v116
  %v157 = vsel %vm82, %v156, %v119
  %v158 = vsel %vm84, %v157, %v122
  %v159 = vsel %vm86, %v158, %v125
  %v160 = vsel %vm88, %v159, %v128
  %v161 = vsel %vm90, %v160, %v131
  %v162 = vsel %vm92, %v161, %v134
  %v163 = vsel %vm94, %v162, %v137
  %v164 = vsel %vm96, %v163, %v140
  %v165 = vsel %vm98, %v164, %v143
  %v166 = vsel %vm100, %v165, %v146
  %v167 = vsel %vm102, %v166, %v149
  %v168 = vsel %vm104, %v167, %v152
  %169 = vrot.lane.b32.xlu0 %v28, 104
  %v170 = vpop.permute.xlu0 %169
  %v172 = vsel %vm76, %v110, %v113
  %v173 = vsel %vm78, %v172, %v116
  %v174 = vsel %vm80, %v173, %v119
  %v175 = vsel %vm82, %v174, %v122
  %v176 = vsel %vm84, %v175, %v125
  %v177 = vsel %vm86, %v176, %v128
  %v178 = vsel %vm88, %v177, %v131
  %v179 = vsel %vm90, %v178, %v134
  %v180 = vsel %vm92, %v179, %v137
  %v181 = vsel %vm94, %v180, %v140
  %v182 = vsel %vm96, %v181, %v143
  %v183 = vsel %vm98, %v182, %v146
  %v184 = vsel %vm100, %v183, %v149
  %v185 = vsel %vm102, %v184, %v152
  %v186 = vsel %vm104, %v185, %v170
  %187 = vrot.lane.b32.xlu0 %v28, 119
  %v188 = vpop.permute.xlu0 %187
  %190 = vrot.lane.b32.xlu0 %v28, 126
  %v191 = vpop.permute.xlu0 %190
  %193 = vrot.lane.b32.xlu0 %v28, 5
  %v194 = vpop.permute.xlu0 %193
  %196 = vrot.lane.b32.xlu0 %v28, 12
  %v197 = vpop.permute.xlu0 %196
  %199 = vrot.lane.b32.xlu0 %v28, 19
  %v200 = vpop.permute.xlu0 %199
  %202 = vrot.lane.b32.xlu0 %v28, 26
  %v203 = vpop.permute.xlu0 %202
  %205 = vrot.lane.b32.xlu0 %v28, 33
  %v206 = vpop.permute.xlu0 %205
  %208 = vrot.lane.b32.xlu0 %v28, 40
  %v209 = vpop.permute.xlu0 %208
  %211 = vrot.lane.b32.xlu0 %v28, 47
  %v212 = vpop.permute.xlu0 %211
  %214 = vrot.lane.b32.xlu0 %v28, 54
  %v215 = vpop.permute.xlu0 %214
  %217 = vrot.lane.b32.xlu0 %v28, 61
  %v218 = vpop.permute.xlu0 %217
  %220 = vrot.lane.b32.xlu0 %v28, 68
  %v221 = vpop.permute.xlu0 %220
  %223 = vrot.lane.b32.xlu0 %v28, 75
  %v224 = vpop.permute.xlu0 %223
  %226 = vrot.lane.b32.xlu0 %v28, 82
  %v227 = vpop.permute.xlu0 %226
  %229 = vrot.lane.b32.xlu0 %v28, 89
  %v230 = vpop.permute.xlu0 %229
  %232 = vrot.lane.b32.xlu0 %v28, 96
  %v233 = vpop.permute.xlu0 %232
  %v235 = vsel %vm76, %v188, %v191
  %v236 = vsel %vm78, %v235, %v194
  %v237 = vsel %vm80, %v236, %v197
  %v238 = vsel %vm82, %v237, %v200
  %v239 = vsel %vm84, %v238, %v203
  %v240 = vsel %vm86, %v239, %v206
  %v241 = vsel %vm88, %v240, %v209
  %v242 = vsel %vm90, %v241, %v212
  %v243 = vsel %vm92, %v242, %v215
  %v244 = vsel %vm94, %v243, %v218
  %v245 = vsel %vm96, %v244, %v221
  %v246 = vsel %vm98, %v245, %v224
  %v247 = vsel %vm100, %v246, %v227
  %v248 = vsel %vm102, %v247, %v230
  %v249 = vsel %vm104, %v248, %v233
  %v250 = vlaneseq
  %v251 = vshrl.u32 %v250, 7
  %v252 = vsub.s32 0, %v251
  %v253 = vrot.slane %v29, %v252
  %v254 = vmul.f32 %v105, %v253
  %v255 = vlaneseq
  %v256 = vshrl.u32 %v255, 7
  %v257 = vsub.s32 1, %v256
  %v258 = vrot.slane %v29, %v257
  %v259 = vmul.f32 %v168, %v258
  %v260 = vadd.f32 %v254, %v259
  %v261 = vlaneseq
  %v262 = vshrl.u32 %v261, 7
  %v263 = vsub.s32 2, %v262
  %v264 = vrot.slane %v29, %v263
  %v265 = vmul.f32 %v186, %v264
  %v266 = vadd.f32 %v260, %v265
  %v267 = vmul.f32 %v168, %v253
  %v268 = vmul.f32 %v186, %v258
  %v269 = vadd.f32 %v267, %v268
  %v270 = vmul.f32 %v249, %v264
  %v271 = vadd.f32 %v269, %v270
  %v272 = vmax.f32 %v266, %v271
  %v273 = vld [vmem:[%s2] sm:$0x1]
  %v275 = vlaneseq
  %v276 = vshrl.u32 %v275, 7
  %v277 = vsub.s32 0, %v276
  %v278 = vrot.slane %v273, %v277
  %v280 = vadd.f32 %v272, %v278
  %v281 = vpack.c.bf16 %v280, %v280
  %v282 = vld [vmem:[%s3] sm:$0xf]
  %v283 = vld [vmem:[%s3 + $0x4] sm:$0xf]
  %v284 = vld [vmem:[%s3 + $0x8] sm:$0xf]
  %v285 = vld [vmem:[%s3 + $0xc] sm:$0xf]
  %v286 = vld [vmem:[%s3 + $0x10] sm:$0xf]
  %v287 = vld [vmem:[%s3 + $0x14] sm:$0xf]
  %v288 = vld [vmem:[%s3 + $0x18] sm:$0xf]
  %v289 = vld [vmem:[%s3 + $0x1c] sm:$0xf]
  %v290 = vld [vmem:[%s3 + $0x20] sm:$0xf]
  %v291 = vld [vmem:[%s3 + $0x24] sm:$0xf]
  %v292 = vld [vmem:[%s3 + $0x28] sm:$0xf]
  %v293 = vld [vmem:[%s3 + $0x2c] sm:$0xf]
  %v294 = vld [vmem:[%s3 + $0x30] sm:$0xf]
  %v295 = vld [vmem:[%s3 + $0x34] sm:$0xf]
  %v296 = vld [vmem:[%s4] sm:$0x1]
  %v298 = vlaneseq
  %v299 = vshrl.u32 %v298, 7
  %v300 = vsub.s32 0, %v299
  %v301 = vrot.slane %v296, %v300
  %v317 = vunpack.c.l.b16 %v282
  %v318 = vunpack.c.l.b16 %v283
  %v319 = vunpack.c.l.b16 %v284
  %v320 = vunpack.c.l.b16 %v285
  %v321 = vunpack.c.l.b16 %v286
  %v322 = vunpack.c.l.b16 %v287
  %v323 = vunpack.c.l.b16 %v288
  %v324 = vunpack.c.l.b16 %v289
  %v325 = vunpack.c.l.b16 %v290
  %v326 = vunpack.c.l.b16 %v291
  %v327 = vunpack.c.l.b16 %v292
  %v328 = vunpack.c.l.b16 %v293
  %v329 = vunpack.c.l.b16 %v294
  %v330 = vunpack.c.l.b16 %v295
  %v331 = vpack.c.b16 %v318, %v317
  %v332 = vpack.c.b16 %v320, %v319
  %v333 = vpack.c.b16 %v322, %v321
  %v334 = vpack.c.b16 %v324, %v323
  %v335 = vpack.c.b16 %v326, %v325
  %v336 = vpack.c.b16 %v328, %v327
  %v337 = vpack.c.b16 %v330, %v329
  %vm345 = vcmask 916480
  %v347 = vsel %vm345, %v281, 0
  %349 = vmatprep.subr.bf16.mxu0 0
  %350 = vmatpush1.bf16.msra.mxu0 %v331
  %351 = vmatprep.subr.bf16.mxu0 0
  %352 = vmatpush1.bf16.msra.mxu0 %v332
  %353 = vmatprep.subr.bf16.mxu0 0
  %354 = vmatpush1.bf16.msra.mxu0 %v333
  %355 = vmatprep.subr.bf16.mxu0 0
  %356 = vmatpush1.bf16.msra.mxu0 %v334
  %357 = vmatprep.subr.bf16.mxu0 0
  %358 = vmatpush1.bf16.msra.mxu0 %v335
  %359 = vmatprep.subr.bf16.mxu0 0
  %360 = vmatpush1.bf16.msra.mxu0 %v336
  %361 = vmatprep.subr.bf16.mxu0 0
  %362 = vmatpush1.bf16.msra.mxu0 %v337
  %363 = vmatprep.subr.bf16.mxu0 0
  %364 = vmatpush1.bf16.msra.mxu0 0
  %365 = vmatprep.subr.bf16.mxu0 0
  %366 = vmatpush1.bf16.msra.mxu0 0
  %367 = vmatprep.subr.bf16.mxu0 0
  %368 = vmatpush1.bf16.msra.mxu0 0
  %369 = vmatprep.subr.bf16.mxu0 0
  %370 = vmatpush1.bf16.msra.mxu0 0
  %371 = vmatprep.subr.bf16.mxu0 0
  %372 = vmatpush1.bf16.msra.mxu0 0
  %373 = vmatprep.subr.bf16.mxu0 0
  %374 = vmatpush1.bf16.msra.mxu0 0
  %375 = vmatprep.subr.bf16.mxu0 0
  %376 = vmatpush1.bf16.msra.mxu0 0
  %377 = vmatprep.subr.bf16.mxu0 0
  %378 = vmatpush1.bf16.msra.mxu0 0
  %379 = vmatprep.subr.bf16.mxu0 0
  %380 = vmatpush1.bf16.msra.mxu0 0
  %381 = vmatprep.mubr.bf16.mxu0 0
  %382 = vmatmul.mubr.bf16.gmra.mrb[0].mxu0 %v347
  %v383 = vpop.f32.mrb[0].mxu0
  %v384 = vadd.f32 %v301, %v383
  %v385 = vpop.f32.mrb[0].mxu0
  %v386 = vpop.f32.mrb[0].mxu0
  %v387 = vpop.f32.mrb[0].mxu0
  %388 = vdwg.mxu0
  %v389 = vmax.f32 %v384, 0.0
  %v390 = vld [vmem:[%s5] sm:$0x1]
  %s391 = sld [smem:[#allocation2]]
  %v392 = vstv %s391
  %vm393 = vcmask 261120
  %v395 = vsel %vm393, %v390, 0
  %v398 = vsel %vm393, %v389, 0
  %400 = vmatprep.subr.mxu0 0.0
  %401 = vmatpush1.xpose.msra.mxu0 %v398
  %402 = vmatprep.subr.mxu0 0.0
  %403 = vmatpush1.xpose.msra.mxu0 0.0
  %404 = vmatprep.subr.mxu0 0.0
  %405 = vmatpush1.xpose.msra.mxu0 0.0
  %406 = vmatprep.subr.mxu0 0.0
  %407 = vmatpush1.xpose.msra.mxu0 0.0
  %408 = vmatprep.subr.mxu0 0.0
  %409 = vmatpush1.xpose.msra.mxu0 0.0
  %410 = vmatprep.subr.mxu0 0.0
  %411 = vmatpush1.xpose.msra.mxu0 0.0
  %412 = vmatprep.subr.mxu0 0.0
  %413 = vmatpush1.xpose.msra.mxu0 0.0
  %414 = vmatprep.subr.mxu0 0.0
  %415 = vmatpush1.xpose.msra.mxu0 0.0
  %416 = vmatprep.subr.mxu0 0.0
  %417 = vmatpush1.xpose.msra.mxu0 0.0
  %418 = vmatprep.subr.mxu0 0.0
  %419 = vmatpush1.xpose.msra.mxu0 0.0
  %420 = vmatprep.subr.mxu0 0.0
  %421 = vmatpush1.xpose.msra.mxu0 0.0
  %422 = vmatprep.subr.mxu0 0.0
  %423 = vmatpush1.xpose.msra.mxu0 0.0
  %424 = vmatprep.subr.mxu0 0.0
  %425 = vmatpush1.xpose.msra.mxu0 0.0
  %426 = vmatprep.subr.mxu0 0.0
  %427 = vmatpush1.xpose.msra.mxu0 0.0
  %428 = vmatprep.subr.mxu0 0.0
  %429 = vmatpush1.xpose.msra.mxu0 0.0
  %430 = vmatprep.subr.mxu0 0.0
  %431 = vmatpush1.xpose.msra.mxu0 0.0
  %432 = vmatprep.subr.mxu0 0.0
  %433 = vmatpush1.xpose.msra.mxu0 0.0
  %434 = vmatprep.subr.mxu0 0.0
  %435 = vmatpush1.xpose.msra.mxu0 0.0
  %436 = vmatprep.subr.mxu0 0.0
  %437 = vmatpush1.xpose.msra.mxu0 0.0
  %438 = vmatprep.subr.mxu0 0.0
  %439 = vmatpush1.xpose.msra.mxu0 0.0
  %440 = vmatprep.subr.mxu0 0.0
  %441 = vmatpush1.xpose.msra.mxu0 0.0
  %442 = vmatprep.subr.mxu0 0.0
  %443 = vmatpush1.xpose.msra.mxu0 0.0
  %444 = vmatprep.subr.mxu0 0.0
  %445 = vmatpush1.xpose.msra.mxu0 0.0
  %446 = vmatprep.subr.mxu0 0.0
  %447 = vmatpush1.xpose.msra.mxu0 0.0
  %448 = vmatprep.subr.mxu0 0.0
  %449 = vmatpush1.xpose.msra.mxu0 0.0
  %450 = vmatprep.subr.mxu0 0.0
  %451 = vmatpush1.xpose.msra.mxu0 0.0
  %452 = vmatprep.subr.mxu0 0.0
  %453 = vmatpush1.xpose.msra.mxu0 0.0
  %454 = vmatprep.subr.mxu0 0.0
  %455 = vmatpush1.xpose.msra.mxu0 0.0
  %456 = vmatprep.subr.mxu0 0.0
  %457 = vmatpush1.xpose.msra.mxu0 0.0
  %458 = vmatprep.subr.mxu0 0.0
  %459 = vmatpush1.xpose.msra.mxu0 0.0
  %460 = vmatprep.subr.mxu0 0.0
  %461 = vmatpush1.xpose.msra.mxu0 0.0
  %462 = vmatprep.subr.mxu0 0.0
  %463 = vmatpush1.xpose.msra.mxu0 0.0
  %464 = vmatprep.mubr.f32.mxu0 0.0
  %465 = vmatmul.mubr.f32.gmra.mrb[0].mxu0 %v395
  %v466 = vpop.f32.mrb[0].mxu0
  %v467 = vadd.f32 %v392, %v466
  %v468 = vpop.f32.mrb[0].mxu0
  %469 = vdwg.mxu0
  %v470 = vsub.f32 0.0, %v467
  %v471 = vmul.f32 %v470, 1.442695
  %v472 = vpow.pop %v471
  %v473 = vadd.f32 %v472, 1.0
  %v474 = vrcp.pop %v473
  %vm475 = vcmask 57344
  %476 = vst.msk [vmem:[%s7] sm:$0x1] %vm475, %v474
  // Predicated region
  $region30: #{cnn_classifier_forward.1} parent=0 // pred_check
    _
  $region31: #{cnn_classifier_forward.1} parent=0 // pred_check_branch
    %478 = sbr.rel (0) target = $region33
  $region32: #{cnn_classifier_forward.1} parent=0 // pred_region
    _
  $region33: #{cnn_classifier_forward.1} parent=0 // pred_fallthru
    _
  // Predicated region
  $region34: #{cnn_classifier_forward.1} parent=0 // pred_check
    _
  $region35: #{cnn_classifier_forward.1} parent=0 // pred_check_branch
    %480 = sbr.rel (0) target = $region37
  $region36: #{cnn_classifier_forward.1} parent=0 // pred_region
    _
  $region37: #{cnn_classifier_forward.1} parent=0 // pred_fallthru
    _

</llo_original>
